<compile_context>
chip_gen: v5e
topology: v5e:2x2
jax: 0.10.0
libtpu: 0.0.40
codegen_flags: <defaults>
</compile_context>

<pallas_src>
import math
import jax
import jax.numpy as jnp
from jax.experimental import pallas as pl
from jax.experimental.pallas import tpu as pltpu

NUM_FRAMES = 8

# Worst-case VMEM working set at 512x1024 f32 blocks:
#   x (2 bufs) + out (2 bufs) + pe (2 bufs) ~ 12 MiB  < 16 MiB v5e scoped default
# (and well under the 32 MiB v6e/v7x defaults), so no vmem_limit_bytes needed.
_MAX_ROW_TILE = 512      # rows per block (multiple of 8, or the full row extent)
_MAX_LANE_TILE = 1024    # lanes per block (multiple of 128)
_SMALL_BYPASS_BYTES = 1 << 20  # below this, let XLA fuse the add instead


def make_positional_encoding(dim: int, max_len: int = NUM_FRAMES) -> jnp.ndarray:
    """Deterministic parameter init, matching the PyTorch __init__ exactly."""
    assert dim % 2 == 0, "PositionalEncoding requires an even embedding dim"
    position = jnp.arange(0, max_len, dtype=jnp.float32)[:, None]            # (max_len, 1)
    div_term = jnp.exp(jnp.arange(0, dim, 2, dtype=jnp.float32)
                       * -(math.log(10000.0) / dim))                         # (dim/2,)
    angles = position * div_term                                             # (max_len, dim/2)
    pe = jnp.zeros((max_len, dim), dtype=jnp.float32)
    pe = pe.at[:, 0::2].set(jnp.sin(angles))
    pe = pe.at[:, 1::2].set(jnp.cos(angles))
    return pe                                                                # (max_len, dim)


def _pos_enc_kernel(x_ref, pe_ref, o_ref):
    # x_ref/o_ref: (tr, tc).  pe_ref: (tr, tc) (pre-tiled) or (1, tc) (sublane
    # broadcast).  Promotion to the output dtype happens here (matches torch).
    o_ref[...] = (x_ref[...] + pe_ref[...]).astype(o_ref.dtype)


def _pick_lane_tile(lanes: int, cap: int) -> int:
    """Largest multiple of 128 that divides `lanes` and is <= cap (lanes % 128 == 0)."""
    best, t = 128, 128
    while t <= min(lanes, cap):
        if lanes % t == 0:
            best = t
        t += 128
    return best


def positional_encoding_forward(x: jnp.ndarray, pe: jnp.ndarray, *,
                                use_pallas: bool | None = None) -> jnp.ndarray:
    """x: (B, S, D); pe: (max_len, D), S <= max_len.  Returns x + pe[None, :S]."""
    B, S, D = x.shape
    max_len, pe_dim = pe.shape
    assert S <= max_len, f"sequence length {S} exceeds pe max_len {max_len}"
    assert pe_dim == D, f"pe dim {pe_dim} != embedding dim {D}"

    out_dtype = jnp.result_type(x.dtype, pe.dtype)   # torch promotion: half+float -> float32

    def _plain():
        return (x + pe[None, :S, :]).astype(out_dtype)

    if use_pallas is None:
        use_pallas = x.size * x.dtype.itemsize >= _SMALL_BYPASS_BYTES
    if not use_pallas:
        return _plain()

    F = S * D
    pe_s = pe[:S, :]          # kept in its own (f32) dtype; promoted inside the kernel
    lane_pad = 0

    if D % 128 == 0:
        # Natural fold: rows = B*S (full sublane occupancy even for small B), lanes = D.
        x2 = x.reshape(B * S, D)
        pe2 = pe_s
        period, lfull = S, D
    elif F % 128 == 0:
        # Fold (part of) S into the lane axis so lanes are a 128-multiple without padding.
        # Typically L == F and pe collapses to a single broadcast row (period == 1).
        L = _pick_lane_tile(F, _MAX_LANE_TILE)
        x2 = x.reshape(B * (F // L), L)
        pe2 = pe_s.reshape(F // L, L)
        period, lfull = F // L, L
    else:
        # Pad D up to the next multiple of 128 so stores stay unmasked lane-dense.
        Dp = ((D + 127) // 128) * 128
        lane_pad = Dp - D
        x2 = jnp.pad(x, ((0, 0), (0, 0), (0, lane_pad))).reshape(B * S, Dp)
        pe2 = jnp.pad(pe_s, ((0, 0), (0, lane_pad)))
        period, lfull = S, Dp

    R = x2.shape[0]  # = B * period

    if period > _MAX_ROW_TILE:
        # TODO(synk): would need wraparound pe row indexing; impossible here (max_len = 8).
        return _plain()

    # Row tile = k whole pe periods so every row block sees an identical pe pattern,
    # kept a multiple of 8 (or the full row extent) per the (8,128) block rule.
    m = 8 // math.gcd(period, 8)              # smallest k with (k*period) % 8 == 0
    kmax = min(B, _MAX_ROW_TILE // period)
    if kmax >= m:
        k = (kmax // m) * m
    elif kmax >= B:
        k = B                                  # tr == full row extent (allowed even if < 8)
    else:
        # TODO(synk): awkward period/batch combination; fall back to the fused XLA add.
        return _plain()
    tr = k * period
    tc = _pick_lane_tile(lfull, _MAX_LANE_TILE)

    # v7x has two TensorCores per chip: make sure the (parallel) grid has >= 2
    # programs whenever the shapes allow it, so both per-TC HBM paths are used.
    if pl.cdiv(R, tr) * (lfull // tc) == 1:
        if k >= 2 * m:
            k = ((k // 2) // m) * m            # still a multiple of m -> tr stays 8-aligned
            tr = k * period
        elif tc % 256 == 0:
            tc //= 2                           # still a 128-multiple dividing lfull

    # Lanes OUTER (slow), rows INNER (fast): pe's block index is constant over
    # the whole inner loop, so it stays VMEM-resident (one DMA per lane block).
    grid = (lfull // tc, pl.cdiv(R, tr))

    if period == 1:
        pe_arr = pe2                           # (1, lfull): in-kernel sublane broadcast
        pe_rows = 1
    else:
        pe_arr = jnp.tile(pe2, (k, 1))         # (tr, lfull): tiny table, tiled once in the wrapper
        pe_rows = tr

    aliases = {0: 0} if x2.dtype == out_dtype else {}

    out2 = pl.pallas_call(
        _pos_enc_kernel,
        out_shape=jax.ShapeDtypeStruct((R, lfull), out_dtype),
        grid_spec=pltpu.PrefetchScalarGridSpec(
            num_scalar_prefetch=0,
            grid=grid,
            in_specs=[
                pl.BlockSpec((tr, tc), lambda c, r: (r, c)),        # x tile
                pl.BlockSpec((pe_rows, tc), lambda c, r: (0, c)),   # pe: resident across rows
            ],
            out_specs=pl.BlockSpec((tr, tc), lambda c, r: (r, c)),
        ),
        compiler_params=pltpu.CompilerParams(
            dimension_semantics=("parallel", "parallel"),
        ),
        input_output_aliases=aliases,
    )(x2, pe_arr)

    if lane_pad:
        return out2.reshape(B, S, lfull)[:, :, :D]
    return out2.reshape(B, S, D)


if __name__ == "__main__":
    B, S, D = 2, NUM_FRAMES, 32   # seq == NUM_FRAMES, hidden dim 32

    key = jax.random.PRNGKey(0)
    x = jax.random.normal(key, (B, S, D), dtype=jnp.float32)
    pe = make_positional_encoding(D, max_len=NUM_FRAMES)

    ref = x + pe[None, :S, :]

    # 1) Pallas kernel path (forced: the toy size is below the small-size bypass).
    out = jax.block_until_ready(positional_encoding_forward(x, pe, use_pallas=True))
    assert out.shape == (B, S, D) and out.dtype == ref.dtype
    assert jnp.allclose(out, ref, atol=1e-6), "kernel mismatch vs reference"

    # 2) Slightly larger batch exercises a multi-block grid through the kernel.
    xb = jax.random.normal(jax.random.PRNGKey(1), (64, S, D), dtype=jnp.float32)
    outb = jax.block_until_ready(positional_encoding_forward(xb, pe, use_pallas=True))
    assert jnp.allclose(outb, xb + pe[None, :S, :], atol=1e-6), "kernel mismatch (batched)"

    # 3) Default path at the toy size takes the small-size bypass (XLA fusion).
    out_bypass = jax.block_until_ready(positional_encoding_forward(x, pe))
    assert jnp.allclose(out_bypass, ref, atol=1e-6), "bypass mismatch vs reference"

    print("KERNEL_OK")
</pallas_src>

<mosaic_0001>
module attributes {stable_mosaic.version = 11 : i64} {
  func.func @_pos_enc_kernel(%arg0: i32, %arg1: i32, %arg2: memref<2x128xf32, #tpu.memory_space<vmem>>, %arg3: memref<1x128xf32, #tpu.memory_space<vmem>>, %arg4: memref<2x128xf32, #tpu.memory_space<vmem>>) attributes {dimension_semantics = [#tpu.dimension_semantics<parallel>, #tpu.dimension_semantics<parallel>], iteration_bounds = array<i64: 2, 1>, scalar_prefetch = 0 : i64, scratch_operands = 0 : i64, tpu.core_type = #tpu.core_type<tc>, window_params = [{transform_indices = @transform_0, window_bounds = array<i64: 2, 128>}, {transform_indices = @transform_1, window_bounds = array<i64: 1, 128>}, {transform_indices = @transform_2, window_bounds = array<i64: 2, 128>}]} {
    %c0 = arith.constant 0 : index
    %c0_0 = arith.constant 0 : index
    %0 = vector.load %arg2[%c0, %c0_0] : memref<2x128xf32, #tpu.memory_space<vmem>>, vector<2x128xf32>
    %c0_1 = arith.constant 0 : index
    %c0_2 = arith.constant 0 : index
    %1 = vector.load %arg3[%c0_1, %c0_2] : memref<1x128xf32, #tpu.memory_space<vmem>>, vector<1x128xf32>
    %2 = vector.broadcast %1 : vector<1x128xf32> to vector<2x128xf32>
    %3 = arith.addf %0, %2 : vector<2x128xf32>
    %c0_3 = arith.constant 0 : index
    %c0_4 = arith.constant 0 : index
    %4 = vector.load %arg4[%c0_3, %c0_4] : memref<2x128xf32, #tpu.memory_space<vmem>>, vector<2x128xf32>
    tpu.vector_store %arg4[%c0_3, %c0_4], %3 {strides = array<i32>} : memref<2x128xf32, #tpu.memory_space<vmem>>, vector<2x128xf32>,
    return
  }
  func.func @transform_0(%arg0: i32, %arg1: i32) -> (i32, i32) {
    %c0_i32 = arith.constant 0 : i32
    return %arg1, %arg0 : i32, i32
  }
  func.func @transform_1(%arg0: i32, %arg1: i32) -> (i32, i32) {
    %c0_i32 = arith.constant 0 : i32
    %c0_i32_0 = arith.constant 0 : i32
    return %c0_i32, %arg0 : i32, i32
  }
  func.func @transform_2(%arg0: i32, %arg1: i32) -> (i32, i32) {
    %c0_i32 = arith.constant 0 : i32
    return %arg1, %arg0 : i32, i32
  }
}

</mosaic_0001>

<llo_original>
// kernel: tpu_custom_call.1
$region0: #{tpu_custom_call.1}
  #allocation0 [shape = 'u32[]', space=smem, size = 0x4, offset = 0x4, fixed_abs, tag = 'smem constant byte address 0x4 - core index']
  #allocation1 [shape = 'u32[72,128]{1,0:T(1,128)}', space=vmem, size = 0x9000, scoped, tag = 'internal scratch']
  %s0 = inlined_call_operand.hbm [shape: f32[2,256], index: 0, kind: input, shape index: {}, may-alias: {0,2}]
  %s1 = inlined_call_operand.vmem [shape: f32[1,256], index: 1, kind: input, shape index: {}]
  %s2 = inlined_call_operand.hbm [shape: f32[2,256], index: 2, kind: output, shape index: {}, may-alias: {0,2}]
  %s3 = sld [smem:[#allocation0]]
  $region45: #{tpu_custom_call.1} parent=0
    _
  %s5 = ssub.s32 1, %s3
  %s6 = scalar_select 0, %s5, %s3
  $region1: #{tpu_custom_call.1} parent=0
    #allocation2 [shape = 'u8[2048]{0}', space=vmem, size = 0x800, scoped, tag = 'input window, operand 0']
    #allocation3 [shape = 's32[2]{0}', space=sflag, size = 0x8, scoped, tag = 'scoped memory for tpu_custom_call.1']
    #allocation4 [shape = 's32[2]{0}', space=sflag, size = 0x8, scoped, tag = 'scoped memory for tpu_custom_call.1']
    #allocation5 [shape = 'u8[2048]{0}', space=vmem, size = 0x800, scoped, tag = 'output window, operand 0']
    %7 = vsyncpa [#allocation3], 0
    %s8 = scalar_lea.sflag [#allocation3], 1
    %9 = vsyncpa %s8, 0
    %10 = vsyncpa [#allocation4], 0
    %s11 = scalar_lea.sflag [#allocation4], 1
    %12 = vsyncpa %s11, 0
    loop: start=0, step=1, limit=4
    $region2: #{tpu_custom_call.1} parent=1 // loop_pre_header
      _
    $region3: #{tpu_custom_call.1} parent=1 // loop_header
      %s14 = sphi 0, %s18
      %p15 = scmp.ge.s32.totalorder %s14, 4
      %s21 = sphi 0, %s33
      %s22 = sphi 0, %s29
      %s23 = sphi 0, %s21
      %s24 = sphi 0, %s22
      %s25 = sphi 0, %s23
      %s26 = sphi 0, %s24
      %s38 = sphi 0, %s40
      %s41 = sphi 0, %s38
      %s42 = sphi 0, %s41
      %s58 = sphi 0, %s42
      %s64 = sphi 0, %s66
      %s67 = sphi 0, %s64
      %s68 = sphi 0, %s67
      %s84 = sphi 0, %s68
      %s92 = sphi 0, %s94
      %s95 = sphi 0, %s92
      %s96 = sphi 0, %s95
      %s112 = sphi 0, %s96
    $region4: #{tpu_custom_call.1} parent=1 // loop_header_branch
      %17 = sbr.rel (%p15) target = $region8
    $region5: #{tpu_custom_call.1} parent=1 // loop_body
      %s19 = ssub.s32 %s14, 1
      %s20 = ssub.s32 %s14, 2
      %s27 = sadd.s32 1, %s22
      %p28 = scmp.ge.s32.totalorder %s27, 1
      %s29 = scalar_select %p28, 0, %s27
      %s30 = sadd.s32 1, %s21
      %s31 = scalar_select %p28, %s30, %s21
      %p32 = scmp.ge.s32.totalorder %s31, 2
      %s33 = scalar_select %p32, 0, %s31
      %s34 = ssub.s32 %s22, %s29
      %s35 = ssub.s32 %s21, %s33
      %s36 = sor.u32 %s34, %s35
      %p37 = scmp.eq.s32.totalorder %s36, 0
      %s39 = sadd.s32 %s38, 1
      %s40 = scalar_select %p37, %s38, %s39
      %p43 = pneg %p37
      %p44 = scmp.eq.s32.totalorder %s14, 1
      %p45 = por %p43, %p44
      %p46 = scmp.ne.s32.totalorder %s38, %s41
      %p47 = scmp.eq.s32.totalorder %s14, 0
      %p48 = por %p46, %p47
      %p49 = scmp.ne.s32.totalorder %s38, %s41
      %p50 = scmp.eq.s32.totalorder %s19, 1
      %p51 = por %p49, %p50
      %p52 = scmp.ne.s32.totalorder %s41, %s42
      %p53 = scmp.eq.s32.totalorder %s19, 0
      %p54 = por %p52, %p53
      %p55 = scmp.ne.s32.totalorder %s41, %s42
      %p56 = scmp.eq.s32.totalorder %s20, 1
      %p57 = por %p55, %p56
      %p59 = scmp.ne.s32.totalorder %s42, %s58
      %p60 = scmp.eq.s32.totalorder %s20, 0
      %p61 = por %p59, %p60
      %s62 = ssub.s32 %s21, %s33
      %p63 = scmp.eq.s32.totalorder %s62, 0
      %s65 = sadd.s32 %s64, 1
      %s66 = scalar_select %p63, %s64, %s65
      %p69 = pneg %p63
      %p70 = scmp.eq.s32.totalorder %s14, 1
      %p71 = por %p69, %p70
      %p72 = scmp.ne.s32.totalorder %s64, %s67
      %p73 = scmp.eq.s32.totalorder %s14, 0
      %p74 = por %p72, %p73
      %p75 = scmp.ne.s32.totalorder %s64, %s67
      %p76 = scmp.eq.s32.totalorder %s19, 1
      %p77 = por %p75, %p76
      %p78 = scmp.ne.s32.totalorder %s67, %s68
      %p79 = scmp.eq.s32.totalorder %s19, 0
      %p80 = por %p78, %p79
      %p81 = scmp.ne.s32.totalorder %s67, %s68
      %p82 = scmp.eq.s32.totalorder %s20, 1
      %p83 = por %p81, %p82
      %p85 = scmp.ne.s32.totalorder %s68, %s84
      %p86 = scmp.eq.s32.totalorder %s20, 0
      %p87 = por %p85, %p86
      %s88 = ssub.s32 %s22, %s29
      %s89 = ssub.s32 %s21, %s33
      %s90 = sor.u32 %s88, %s89
      %p91 = scmp.eq.s32.totalorder %s90, 0
      %s93 = sadd.s32 %s92, 1
      %s94 = scalar_select %p91, %s92, %s93
      %p97 = pneg %p91
      %p98 = scmp.eq.s32.totalorder %s14, 1
      %p99 = por %p97, %p98
      %p100 = scmp.ne.s32.totalorder %s92, %s95
      %p101 = scmp.eq.s32.totalorder %s14, 0
      %p102 = por %p100, %p101
      %p103 = scmp.ne.s32.totalorder %s92, %s95
      %p104 = scmp.eq.s32.totalorder %s19, 1
      %p105 = por %p103, %p104
      %p106 = scmp.ne.s32.totalorder %s95, %s96
      %p107 = scmp.eq.s32.totalorder %s19, 0
      %p108 = por %p106, %p107
      %p109 = scmp.ne.s32.totalorder %s95, %s96
      %p110 = scmp.eq.s32.totalorder %s20, 1
      %p111 = por %p109, %p110
      %p113 = scmp.ne.s32.totalorder %s96, %s112
      %p114 = scmp.eq.s32.totalorder %s20, 0
      %p115 = por %p113, %p114
      %p116 = scmp.le.s32.totalorder 1, %s14
      %p117 = scmp.lt.s32.totalorder %s14, 3
      %p118 = pnand %p116, %p117
      %p119 = pneg %p118
      // Predicated region
      $region9: #{tpu_custom_call.1} parent=5 // pred_check
        _
      $region10: #{tpu_custom_call.1} parent=5 // pred_check_branch
        %121 = sbr.rel (%p118) target = $region12
      $region11: #{tpu_custom_call.1} parent=5 // pred_region
        %s122 = ssub.s32 %s14, 1
      $region12: #{tpu_custom_call.1} parent=5 // pred_fallthru
        _
      %p123 = scmp.lt.s32.totalorder %s14, 2
      // Predicated region
      $region13: #{tpu_custom_call.1} parent=5 // pred_check
        %p124 = pneg %p123
      $region14: #{tpu_custom_call.1} parent=5 // pred_check_branch
        %126 = sbr.rel (%p124) target = $region16
      $region15: #{tpu_custom_call.1} parent=5 // pred_region
        // Predicated region
        $region17: #{tpu_custom_call.1} parent=15 // pred_check
          %p127 = pneg %p48
        $region18: #{tpu_custom_call.1} parent=15 // pred_check_branch
          %129 = sbr.rel (%p127) target = $region20
        $region19: #{tpu_custom_call.1} parent=15 // pred_region
          %s130 = sand.u32 %s38, 1
          %s131 = scalar_lea.sflag [#allocation3], %s130
          %s132 = sand.u32 %s38, 1
          %s133 = smul.addr %s132, 2
          %s134 = scalar_lea.vmem [#allocation2], %s133
          %136 = vsyncadd %s131, 0
          %s137 = smul.addr %s22, 2
          %s138 = sadd.s32 %s21, %s137
          %s139 = smul.addr %s138, 2
          %s140 = scalar_lea.hbm %s0, %s139
          %s142 = sshll.u32 %s140, 4
          %s143 = int_to_ptr.hbm [resolvable:$true] %s142
          %s144 = sshll.u32 %s134, 4
          %s145 = int_to_ptr.vmem [resolvable:$true] %s144
          %147 = dma.hbm_to_vmem [thread:$0]  %s143, 32, %s145, %s131
        $region20: #{tpu_custom_call.1} parent=15 // pred_fallthru
          _
        // Predicated region
        $region21: #{tpu_custom_call.1} parent=15 // pred_check
          %p148 = pneg %p74
        $region22: #{tpu_custom_call.1} parent=15 // pred_check_branch
          %150 = sbr.rel (%p148) target = $region24
        $region23: #{tpu_custom_call.1} parent=15 // pred_region
          %p151 = scmp.lt.s32.totalorder %s21, 1
          %s152 = scalar_select %p151, %s21, 1
          %s153 = scalar_lea.vmem %s1, %s152
        $region24: #{tpu_custom_call.1} parent=15 // pred_fallthru
          _
      $region16: #{tpu_custom_call.1} parent=5 // pred_fallthru
        _
      %p154 = scmp.le.s32.totalorder 1, %s14
      %p155 = scmp.lt.s32.totalorder %s14, 3
      %p156 = pnand %p154, %p155
      %p157 = pneg %p156
      // Predicated region
      $region25: #{tpu_custom_call.1} parent=5 // pred_check
        _
      $region26: #{tpu_custom_call.1} parent=5 // pred_check_branch
        %159 = sbr.rel (%p156) target = $region28
      $region27: #{tpu_custom_call.1} parent=5 // pred_region
        %s160 = ssub.s32 %s14, 1
        %s161 = sand.u32 %s41, 1
        %s162 = scalar_lea.sflag [#allocation3], %s161
        %s163 = sand.u32 %s41, 1
        %s164 = smul.addr %s163, 2
        %s165 = scalar_lea.vmem [#allocation2], %s164
        // Predicated region
        $region29: #{tpu_custom_call.1} parent=27 // pred_check
          %p166 = pneg %p54
        $region30: #{tpu_custom_call.1} parent=27 // pred_check_branch
          %168 = sbr.rel (%p166) target = $region32
        $region31: #{tpu_custom_call.1} parent=27 // pred_region
          %170 = dma.done %s162, 32
        $region32: #{tpu_custom_call.1} parent=27 // pred_fallthru
          _
        %s171 = sand.u32 %s41, 1
        %s172 = scalar_lea.sflag [#allocation3], %s171
        %s173 = sand.u32 %s41, 1
        %s174 = smul.addr %s173, 2
        %s175 = scalar_lea.vmem [#allocation2], %s174
        %p176 = pneg %p54
        %p177 = pneg %p51
        %p178 = scmp.lt.s32.totalorder %s23, 1
        %s179 = scalar_select %p178, %s23, 1
        %s180 = scalar_lea.vmem %s1, %s179
        %p181 = pneg %p80
        %p182 = pneg %p77
        %p183 = pneg %p108
        %p184 = pneg %p105
        %s185 = sand.u32 %s95, 1
        %s186 = scalar_lea.sflag [#allocation4], %s185
        %s187 = sand.u32 %s95, 1
        %s188 = smul.addr %s187, 2
        %s189 = scalar_lea.vmem [#allocation5], %s188
        %p190 = scmp.lt.s32.totalorder %s23, 1
        %s191 = scalar_select %p190, %s23, 1
        %s192 = scalar_lea.vmem %s1, %s191
        %v193 = vld [vmem:[%s165] sm:$0x3]
        %v194 = vld [vmem:[%s192] sm:$0x1]
        %v196 = vperm.slane %v194, 0
        %v198 = vadd.f32 %v193, %v196
        %199 = vst [vmem:[%s189] sm:$0x3] %v198
        %s200 = sand.u32 %s95, 1
        %s201 = scalar_lea.sflag [#allocation4], %s200
        %s202 = sand.u32 %s95, 1
        %s203 = smul.addr %s202, 2
        %s204 = scalar_lea.vmem [#allocation5], %s203
        // Predicated region
        $region33: #{tpu_custom_call.1} parent=27 // pred_check
          %p205 = pneg %p105
        $region34: #{tpu_custom_call.1} parent=27 // pred_check_branch
          %207 = sbr.rel (%p205) target = $region36
        $region35: #{tpu_custom_call.1} parent=27 // pred_region
          %209 = vsyncadd %s201, 0
          %s210 = smul.addr %s24, 2
          %s211 = sadd.s32 %s23, %s210
          %s212 = smul.addr %s211, 2
          %s213 = scalar_lea.hbm %s2, %s212
          %s215 = sshll.u32 %s204, 4
          %s216 = int_to_ptr.vmem [resolvable:$true] %s215
          %s217 = sshll.u32 %s213, 4
          %s218 = int_to_ptr.hbm [resolvable:$true] %s217
          %220 = dma.vmem_to_hbm [thread:$0]  %s216, 32, %s218, %s201
        $region36: #{tpu_custom_call.1} parent=27 // pred_fallthru
          _
      $region28: #{tpu_custom_call.1} parent=5 // pred_fallthru
        _
      %p221 = scmp.le.s32.totalorder 2, %s14
      // Predicated region
      $region37: #{tpu_custom_call.1} parent=5 // pred_check
        %p222 = pneg %p221
      $region38: #{tpu_custom_call.1} parent=5 // pred_check_branch
        %224 = sbr.rel (%p222) target = $region40
      $region39: #{tpu_custom_call.1} parent=5 // pred_region
        %s225 = ssub.s32 %s14, 2
        // Predicated region
        $region41: #{tpu_custom_call.1} parent=39 // pred_check
          %p226 = pneg %p111
        $region42: #{tpu_custom_call.1} parent=39 // pred_check_branch
          %228 = sbr.rel (%p226) target = $region44
        $region43: #{tpu_custom_call.1} parent=39 // pred_region
          %s229 = sand.u32 %s96, 1
          %s230 = scalar_lea.sflag [#allocation4], %s229
          %s231 = sand.u32 %s96, 1
          %s232 = smul.addr %s231, 2
          %s233 = scalar_lea.vmem [#allocation5], %s232
          %235 = dma.done %s230, 32
        $region44: #{tpu_custom_call.1} parent=39 // pred_fallthru
          _
      $region40: #{tpu_custom_call.1} parent=5 // pred_fallthru
        _
    $region6: #{tpu_custom_call.1} parent=1 // loop_footer
      %s18 = sadd.s32 1, %s14
    $region7: #{tpu_custom_call.1} parent=1 // loop_footer_branch
      %13 = sbr.rel target = $region3
    $region8: #{tpu_custom_call.1} parent=1 // loop_exit
      _
    %236 = vsyncpa [#allocation3], 1
    %s237 = scalar_lea.sflag [#allocation3], 1
    %238 = vsyncpa %s237, 1
    %239 = vsyncpa [#allocation4], 1
    %s240 = scalar_lea.sflag [#allocation4], 1
    %241 = vsyncpa %s240, 1

</llo_original>
